<compile_context>
chip_gen: v6e
topology: v6e:2x2x1
jax: 0.10.0
libtpu: 0.0.40
codegen_flags: <defaults>
</compile_context>

<pallas_src>
import functools

import jax
import jax.numpy as jnp
from jax.experimental import pallas as pl
from jax.experimental.pallas import tpu as pltpu


def _round_up(x, m):
    return ((x + m - 1) // m) * m


# ----------------------------------------------------------------------------
# Fused Pallas kernel: all GCN layers + sum-pool + fc1/relu + fc2
# ----------------------------------------------------------------------------
def _gcn_fused_kernel(
    batch_ref,   # (1, N)    int32   graph id per node
    a_ref,       # (N, N)    bf16    A + I (unnormalized, self loops added)
    dis_ref,     # (N, 1)    f32     d^{-1/2} per node
    x0_ref,      # (N, D)    bf16    embedded node features
    gw_ref,      # (L, D, D) bf16    stacked GCNConv weights
    gb_ref,      # (L, 1, D) f32     stacked GCNConv biases
    w1_ref,      # (D, D)    f32     fc1 weight
    b1_ref,      # (1, D)    f32     fc1 bias
    w2_ref,      # (D, Cp)   f32     fc2 weight (class dim padded to 128)
    b2_ref,      # (1, Cp)   f32     fc2 bias   (padded)
    o_ref,       # (Bp, Cp)  f32     output (padded)
    *,
    num_layers,
):
    a = a_ref[...]          # bf16, stays resident in vregs/VMEM across layers
    dis = dis_ref[...]      # (N, 1) f32 row scale
    x = x0_ref[...]         # bf16 traced carry (no scratch roundtrip)

    # Static (unrolled) layer loop — L is tiny; everything stays on-chip.
    for l in range(num_layers):
        w = gw_ref[l]       # (D, D) bf16
        b = gb_ref[l]       # (1, D) f32

        # GCNConv + relu:  relu( D^-1/2 (A+I) D^-1/2 (x W) + b )
        xw = jnp.dot(x, w, preferred_element_type=jnp.float32)
        xw = (xw * dis).astype(jnp.bfloat16)                       # right norm
        h = jnp.dot(a, xw, preferred_element_type=jnp.float32) * dis + b
        h = jnp.maximum(h, 0.0).astype(jnp.bfloat16)

        # Second GCNConv with the same layer (as in the reference forward);
        # dropout == identity in eval mode.
        hw = jnp.dot(h, w, preferred_element_type=jnp.float32)
        hw = (hw * dis).astype(jnp.bfloat16)
        x = (jnp.dot(a, hw, preferred_element_type=jnp.float32) * dis + b
             ).astype(jnp.bfloat16)

    # Sum-pool nodes per graph: build the one-hot pooling matrix on the fly
    # from the batch ids (no [B, N] array ever touches HBM).
    b_pad = o_ref.shape[0]
    n = a_ref.shape[0]
    graph_iota = jax.lax.broadcasted_iota(jnp.int32, (b_pad, n), 0)
    pool = (graph_iota == batch_ref[...]).astype(jnp.bfloat16)      # (Bp, N)
    pooled = jnp.dot(pool, x, preferred_element_type=jnp.float32)   # (Bp, D)

    # Head: relu(fc1) -> (dropout == identity) -> fc2, lane-dense output store.
    h = jnp.maximum(
        jnp.dot(pooled, w1_ref[...], preferred_element_type=jnp.float32)
        + b1_ref[...],
        0.0,
    )
    # TODO(synk): dropout(p=0.5, training) between fc1 and fc2 treated as identity.
    o_ref[...] = (
        jnp.dot(h, w2_ref[...], preferred_element_type=jnp.float32) + b2_ref[...]
    )


# ----------------------------------------------------------------------------
# Glue (plain JAX): embedding gather, adjacency + degree build, padding
# ----------------------------------------------------------------------------
def build_adj_and_deg(edge_index, num_nodes):
    """Return (A + I) as bf16 and d^{-1/2} as f32 column vector.

    Normalization D^{-1/2} (.) D^{-1/2} is applied *inside* the kernel as two
    row scales, so this prologue avoids the extra N^2 f32 scaled temporary and
    the bf16 A stays exact (small integer edge counts).
    Duplicate edges accumulate (scatter-add semantics); self-loops are added
    only for nodes that do not already have one (torch_geometric GCNConv).
    """
    src, dst = edge_index[0], edge_index[1]
    a = jnp.zeros((num_nodes, num_nodes), jnp.float32)
    a = a.at[dst, src].add(1.0)  # message flows src -> dst; duplicates sum
    diag = jnp.diagonal(a)
    a = a + jnp.diag(jnp.where(diag == 0.0, 1.0, 0.0))
    deg = jnp.sum(a, axis=1)
    d_inv_sqrt = 1.0 / jnp.sqrt(jnp.maximum(deg, 1e-12))
    return a.astype(jnp.bfloat16), d_inv_sqrt.reshape(num_nodes, 1).astype(
        jnp.float32
    )


def gcn_forward(params, node_ids, edge_index, batch, num_graphs):
    x0 = params["embedding"][node_ids].astype(jnp.bfloat16)   # [N, D] gather
    n, d = x0.shape
    a_si, d_inv_sqrt = build_adj_and_deg(edge_index, n)

    gw = jnp.stack(params["gcn_w"], axis=0).astype(jnp.bfloat16)       # [L,D,D]
    gb = jnp.stack([b.reshape(1, d) for b in params["gcn_b"]], 0).astype(
        jnp.float32
    )                                                                   # [L,1,D]
    num_layers = gw.shape[0]

    c = params["fc2_w"].shape[1]
    c_pad = _round_up(c, 128)                  # lane-dense output (41 -> 128)
    b_pad = _round_up(max(num_graphs, 1), 8)   # sublane-dense output rows
    w2_p = jnp.zeros((d, c_pad), jnp.float32).at[:, :c].set(params["fc2_w"])
    b2_p = jnp.zeros((1, c_pad), jnp.float32).at[:, :c].set(params["fc2_b"])
    b1 = params["fc1_b"].reshape(1, d).astype(jnp.float32)
    batch_2d = batch.reshape(1, n).astype(jnp.int32)

    # Explicit VMEM budget (operands + a handful of (N,D)/(Bp,N) f32 temps),
    # with ~1.3x headroom; floor at 16 MiB, cap below v7x physical.
    est_bytes = (
        n * n * 2                       # A (bf16, single-buffered: no grid)
        + n * 128 * 4                   # d^{-1/2} column, lane-padded
        + n * d * 2                     # x0
        + num_layers * d * d * 2        # stacked GCN weights
        + num_layers * 8 * 128 * 4      # stacked GCN biases (padded)
        + d * d * 4 + 8 * d * 4         # fc1
        + d * c_pad * 4 + 8 * c_pad * 4  # fc2 (padded)
        + b_pad * c_pad * 4             # output
        + 8 * n * 4                     # batch ids (padded)
        + 8 * n * d * 4                 # traced f32/bf16 intermediates
        + b_pad * n * 2                 # pooling one-hot
    )
    vmem_limit = int(min(96 * 1024 * 1024, max(16 * 1024 * 1024, 1.3 * est_bytes)))

    # No grid => single kernel invocation, whole arrays resident in VMEM,
    # no pipeline double-buffering of the N^2 adjacency.
    out_padded = pl.pallas_call(
        functools.partial(_gcn_fused_kernel, num_layers=num_layers),
        out_shape=jax.ShapeDtypeStruct((b_pad, c_pad), jnp.float32),
        compiler_params=pltpu.CompilerParams(vmem_limit_bytes=vmem_limit),
    )(
        batch_2d, a_si, d_inv_sqrt, x0, gw, gb,
        params["fc1_w"].astype(jnp.float32), b1, w2_p, b2_p,
    )

    # Padded rows (graph ids >= num_graphs) hold bias-propagated garbage; the
    # slice below discards them before anyone can consume them.
    return out_padded[:num_graphs, :c]


# ----------------------------------------------------------------------------
# Deterministic parameter init + example run
# ----------------------------------------------------------------------------
def init_params(key, sd, hidden_layers, vocab=1340, num_classes=41):
    keys = jax.random.split(key, 4 + 2 * hidden_layers)
    params = {
        "embedding": 0.1 * jax.random.normal(keys[0], (vocab, sd), jnp.float32),
        "fc1_w": 0.1 * jax.random.normal(keys[1], (sd, sd), jnp.float32),
        "fc1_b": 0.01 * jax.random.normal(keys[2], (sd,), jnp.float32),
        "fc2_w": 0.1 * jax.random.normal(keys[3], (sd, num_classes), jnp.float32),
        "fc2_b": jnp.zeros((num_classes,), jnp.float32),
        "gcn_w": [],
        "gcn_b": [],
    }
    for i in range(hidden_layers):
        params["gcn_w"].append(
            0.1 * jax.random.normal(keys[4 + 2 * i], (sd, sd), jnp.float32)
        )
        params["gcn_b"].append(
            0.01 * jax.random.normal(keys[5 + 2 * i], (sd,), jnp.float32)
        )
    return params


if __name__ == "__main__":
    sd = 32            # state_dimension
    hidden_layers = 2  # hidden_layers
    num_nodes = 16
    num_edges = 24
    num_graphs = 2
    num_classes = 41

    key = jax.random.PRNGKey(0)
    k_param, k_ids, k_src, k_dst = jax.random.split(key, 4)

    params = init_params(k_param, sd, hidden_layers, num_classes=num_classes)

    # data.x: node token ids (already squeezed), data.edge_index, data.batch
    node_ids = jax.random.randint(k_ids, (num_nodes,), 0, 1340, dtype=jnp.int32)
    src = jax.random.randint(k_src, (num_edges,), 0, num_nodes, dtype=jnp.int32)
    dst = jax.random.randint(k_dst, (num_edges,), 0, num_nodes, dtype=jnp.int32)
    edge_index = jnp.stack([src, dst], axis=0)  # [2, E]
    batch = jnp.concatenate(
        [
            jnp.zeros((num_nodes // 2,), jnp.int32),
            jnp.ones((num_nodes - num_nodes // 2,), jnp.int32),
        ]
    )

    out = gcn_forward(params, node_ids, edge_index, batch, num_graphs)
    out = jax.block_until_ready(out)
    assert out.shape == (num_graphs, num_classes), out.shape
    assert jnp.all(jnp.isfinite(out))
    print("KERNEL_OK")
</pallas_src>

<mosaic_0001>
module attributes {stable_mosaic.version = 11 : i64} {
  func.func @_gcn_fused_kernel(%arg0: memref<1x16xi32, #tpu.memory_space<vmem>>, %arg1: memref<16x16xbf16, #tpu.memory_space<vmem>>, %arg2: memref<16x1xf32, #tpu.memory_space<vmem>>, %arg3: memref<16x32xbf16, #tpu.memory_space<vmem>>, %arg4: memref<2x32x32xbf16, #tpu.memory_space<vmem>>, %arg5: memref<2x1x32xf32, #tpu.memory_space<vmem>>, %arg6: memref<32x32xf32, #tpu.memory_space<vmem>>, %arg7: memref<1x32xf32, #tpu.memory_space<vmem>>, %arg8: memref<32x128xf32, #tpu.memory_space<vmem>>, %arg9: memref<1x128xf32, #tpu.memory_space<vmem>>, %arg10: memref<8x128xf32, #tpu.memory_space<vmem>>) attributes {dimension_semantics = [], scalar_prefetch = 0 : i64, scratch_operands = 0 : i64, tpu.core_type = #tpu.core_type<tc>} {
    %c0 = arith.constant 0 : index
    %c0_0 = arith.constant 0 : index
    %0 = vector.load %arg1[%c0, %c0_0] : memref<16x16xbf16, #tpu.memory_space<vmem>>, vector<16x16xbf16>
    %c0_1 = arith.constant 0 : index
    %c0_2 = arith.constant 0 : index
    %1 = vector.load %arg2[%c0_1, %c0_2] : memref<16x1xf32, #tpu.memory_space<vmem>>, vector<16x1xf32>
    %c0_3 = arith.constant 0 : index
    %c0_4 = arith.constant 0 : index
    %2 = vector.load %arg3[%c0_3, %c0_4] : memref<16x32xbf16, #tpu.memory_space<vmem>>, vector<16x32xbf16>
    %c0_5 = arith.constant 0 : index
    %c0_6 = arith.constant 0 : index
    %c0_7 = arith.constant 0 : index
    %3 = vector.load %arg4[%c0_5, %c0_6, %c0_7] : memref<2x32x32xbf16, #tpu.memory_space<vmem>>, vector<1x32x32xbf16>
    %4 = vector.shape_cast %3 : vector<1x32x32xbf16> to vector<32x32xbf16>
    %c0_8 = arith.constant 0 : index
    %c0_9 = arith.constant 0 : index
    %c0_10 = arith.constant 0 : index
    %5 = vector.load %arg5[%c0_8, %c0_9, %c0_10] : memref<2x1x32xf32, #tpu.memory_space<vmem>>, vector<1x1x32xf32>
    %6 = vector.shape_cast %5 : vector<1x1x32xf32> to vector<1x32xf32>
    %cst = arith.constant dense<0.000000e+00> : vector<16x32xf32>
    %7 = tpu.matmul %2, %4, %cst {dimension_numbers = #tpu.dot_dimension_numbers<[1], [0], [0], [1], [0, 0, 1, 1], [], []>} : vector<16x32xbf16>, vector<32x32xbf16>, vector<16x32xf32> -> vector<16x32xf32>
    %8 = vector.broadcast %1 : vector<16x1xf32> to vector<16x32xf32>
    %9 = arith.mulf %7, %8 : vector<16x32xf32>
    %10 = arith.truncf %9 : vector<16x32xf32> to vector<16x32xbf16>
    %cst_11 = arith.constant dense<0.000000e+00> : vector<16x32xf32>
    %11 = tpu.matmul %0, %10, %cst_11 {dimension_numbers = #tpu.dot_dimension_numbers<[1], [0], [0], [1], [0, 0, 1, 1], [], []>} : vector<16x16xbf16>, vector<16x32xbf16>, vector<16x32xf32> -> vector<16x32xf32>
    %12 = vector.broadcast %1 : vector<16x1xf32> to vector<16x32xf32>
    %13 = arith.mulf %11, %12 : vector<16x32xf32>
    %14 = vector.broadcast %6 : vector<1x32xf32> to vector<16x32xf32>
    %15 = arith.addf %13, %14 : vector<16x32xf32>
    %cst_12 = arith.constant 0.000000e+00 : f32
    %16 = vector.broadcast %cst_12 : f32 to vector<16x32xf32>
    %17 = arith.maximumf %15, %16 : vector<16x32xf32>
    %18 = arith.truncf %17 : vector<16x32xf32> to vector<16x32xbf16>
    %cst_13 = arith.constant dense<0.000000e+00> : vector<16x32xf32>
    %19 = tpu.matmul %18, %4, %cst_13 {dimension_numbers = #tpu.dot_dimension_numbers<[1], [0], [0], [1], [0, 0, 1, 1], [], []>} : vector<16x32xbf16>, vector<32x32xbf16>, vector<16x32xf32> -> vector<16x32xf32>
    %20 = vector.broadcast %1 : vector<16x1xf32> to vector<16x32xf32>
    %21 = arith.mulf %19, %20 : vector<16x32xf32>
    %22 = arith.truncf %21 : vector<16x32xf32> to vector<16x32xbf16>
    %cst_14 = arith.constant dense<0.000000e+00> : vector<16x32xf32>
    %23 = tpu.matmul %0, %22, %cst_14 {dimension_numbers = #tpu.dot_dimension_numbers<[1], [0], [0], [1], [0, 0, 1, 1], [], []>} : vector<16x16xbf16>, vector<16x32xbf16>, vector<16x32xf32> -> vector<16x32xf32>
    %24 = vector.broadcast %1 : vector<16x1xf32> to vector<16x32xf32>
    %25 = arith.mulf %23, %24 : vector<16x32xf32>
    %26 = vector.broadcast %6 : vector<1x32xf32> to vector<16x32xf32>
    %27 = arith.addf %25, %26 : vector<16x32xf32>
    %28 = arith.truncf %27 : vector<16x32xf32> to vector<16x32xbf16>
    %c1 = arith.constant 1 : index
    %c0_15 = arith.constant 0 : index
    %c0_16 = arith.constant 0 : index
    %29 = vector.load %arg4[%c1, %c0_15, %c0_16] : memref<2x32x32xbf16, #tpu.memory_space<vmem>>, vector<1x32x32xbf16>
    %30 = vector.shape_cast %29 : vector<1x32x32xbf16> to vector<32x32xbf16>
    %c1_17 = arith.constant 1 : index
    %c0_18 = arith.constant 0 : index
    %c0_19 = arith.constant 0 : index
    %31 = vector.load %arg5[%c1_17, %c0_18, %c0_19] : memref<2x1x32xf32, #tpu.memory_space<vmem>>, vector<1x1x32xf32>
    %32 = vector.shape_cast %31 : vector<1x1x32xf32> to vector<1x32xf32>
    %cst_20 = arith.constant dense<0.000000e+00> : vector<16x32xf32>
    %33 = tpu.matmul %28, %30, %cst_20 {dimension_numbers = #tpu.dot_dimension_numbers<[1], [0], [0], [1], [0, 0, 1, 1], [], []>} : vector<16x32xbf16>, vector<32x32xbf16>, vector<16x32xf32> -> vector<16x32xf32>
    %34 = vector.broadcast %1 : vector<16x1xf32> to vector<16x32xf32>
    %35 = arith.mulf %33, %34 : vector<16x32xf32>
    %36 = arith.truncf %35 : vector<16x32xf32> to vector<16x32xbf16>
    %cst_21 = arith.constant dense<0.000000e+00> : vector<16x32xf32>
    %37 = tpu.matmul %0, %36, %cst_21 {dimension_numbers = #tpu.dot_dimension_numbers<[1], [0], [0], [1], [0, 0, 1, 1], [], []>} : vector<16x16xbf16>, vector<16x32xbf16>, vector<16x32xf32> -> vector<16x32xf32>
    %38 = vector.broadcast %1 : vector<16x1xf32> to vector<16x32xf32>
    %39 = arith.mulf %37, %38 : vector<16x32xf32>
    %40 = vector.broadcast %32 : vector<1x32xf32> to vector<16x32xf32>
    %41 = arith.addf %39, %40 : vector<16x32xf32>
    %cst_22 = arith.constant 0.000000e+00 : f32
    %42 = vector.broadcast %cst_22 : f32 to vector<16x32xf32>
    %43 = arith.maximumf %41, %42 : vector<16x32xf32>
    %44 = arith.truncf %43 : vector<16x32xf32> to vector<16x32xbf16>
    %cst_23 = arith.constant dense<0.000000e+00> : vector<16x32xf32>
    %45 = tpu.matmul %44, %30, %cst_23 {dimension_numbers = #tpu.dot_dimension_numbers<[1], [0], [0], [1], [0, 0, 1, 1], [], []>} : vector<16x32xbf16>, vector<32x32xbf16>, vector<16x32xf32> -> vector<16x32xf32>
    %46 = vector.broadcast %1 : vector<16x1xf32> to vector<16x32xf32>
    %47 = arith.mulf %45, %46 : vector<16x32xf32>
    %48 = arith.truncf %47 : vector<16x32xf32> to vector<16x32xbf16>
    %cst_24 = arith.constant dense<0.000000e+00> : vector<16x32xf32>
    %49 = tpu.matmul %0, %48, %cst_24 {dimension_numbers = #tpu.dot_dimension_numbers<[1], [0], [0], [1], [0, 0, 1, 1], [], []>} : vector<16x16xbf16>, vector<16x32xbf16>, vector<16x32xf32> -> vector<16x32xf32>
    %50 = vector.broadcast %1 : vector<16x1xf32> to vector<16x32xf32>
    %51 = arith.mulf %49, %50 : vector<16x32xf32>
    %52 = vector.broadcast %32 : vector<1x32xf32> to vector<16x32xf32>
    %53 = arith.addf %51, %52 : vector<16x32xf32>
    %54 = arith.truncf %53 : vector<16x32xf32> to vector<16x32xbf16>
    %55 = tpu.iota {dimensions = array<i32: 0>} : vector<8x16xi32>
    %c0_25 = arith.constant 0 : index
    %c0_26 = arith.constant 0 : index
    %56 = vector.load %arg0[%c0_25, %c0_26] : memref<1x16xi32, #tpu.memory_space<vmem>>, vector<1x16xi32>
    %57 = vector.broadcast %56 : vector<1x16xi32> to vector<8x16xi32>
    %58 = arith.cmpi eq, %55, %57 : vector<8x16xi32>
    %59 = arith.extui %58 : vector<8x16xi1> to vector<8x16xi32>
    %60 = arith.sitofp %59 : vector<8x16xi32> to vector<8x16xf32>
    %61 = arith.truncf %60 : vector<8x16xf32> to vector<8x16xbf16>
    %cst_27 = arith.constant dense<0.000000e+00> : vector<8x32xf32>
    %62 = tpu.matmul %61, %54, %cst_27 {dimension_numbers = #tpu.dot_dimension_numbers<[1], [0], [0], [1], [0, 0, 1, 1], [], []>} : vector<8x16xbf16>, vector<16x32xbf16>, vector<8x32xf32> -> vector<8x32xf32>
    %c0_28 = arith.constant 0 : index
    %c0_29 = arith.constant 0 : index
    %63 = vector.load %arg6[%c0_28, %c0_29] : memref<32x32xf32, #tpu.memory_space<vmem>>, vector<32x32xf32>
    %cst_30 = arith.constant dense<0.000000e+00> : vector<8x32xf32>
    %64 = tpu.matmul %62, %63, %cst_30 {dimension_numbers = #tpu.dot_dimension_numbers<[1], [0], [0], [1], [0, 0, 1, 1], [], []>} : vector<8x32xf32>, vector<32x32xf32>, vector<8x32xf32> -> vector<8x32xf32>
    %c0_31 = arith.constant 0 : index
    %c0_32 = arith.constant 0 : index
    %65 = vector.load %arg7[%c0_31, %c0_32] : memref<1x32xf32, #tpu.memory_space<vmem>>, vector<1x32xf32>
    %66 = vector.broadcast %65 : vector<1x32xf32> to vector<8x32xf32>
    %67 = arith.addf %64, %66 : vector<8x32xf32>
    %cst_33 = arith.constant 0.000000e+00 : f32
    %68 = vector.broadcast %cst_33 : f32 to vector<8x32xf32>
    %69 = arith.maximumf %67, %68 : vector<8x32xf32>
    %c0_34 = arith.constant 0 : index
    %c0_35 = arith.constant 0 : index
    %70 = vector.load %arg8[%c0_34, %c0_35] : memref<32x128xf32, #tpu.memory_space<vmem>>, vector<32x128xf32>
    %cst_36 = arith.constant dense<0.000000e+00> : vector<8x128xf32>
    %71 = tpu.matmul %69, %70, %cst_36 {dimension_numbers = #tpu.dot_dimension_numbers<[1], [0], [0], [1], [0, 0, 1, 1], [], []>} : vector<8x32xf32>, vector<32x128xf32>, vector<8x128xf32> -> vector<8x128xf32>
    %c0_37 = arith.constant 0 : index
    %c0_38 = arith.constant 0 : index
    %72 = vector.load %arg9[%c0_37, %c0_38] : memref<1x128xf32, #tpu.memory_space<vmem>>, vector<1x128xf32>
    %73 = vector.broadcast %72 : vector<1x128xf32> to vector<8x128xf32>
    %74 = arith.addf %71, %73 : vector<8x128xf32>
    %c0_39 = arith.constant 0 : index
    %c0_40 = arith.constant 0 : index
    %75 = vector.load %arg10[%c0_39, %c0_40] : memref<8x128xf32, #tpu.memory_space<vmem>>, vector<8x128xf32>
    tpu.vector_store %arg10[%c0_39, %c0_40], %74 {strides = array<i32>} : memref<8x128xf32, #tpu.memory_space<vmem>>, vector<8x128xf32>,
    return
  }
}

</mosaic_0001>

<llo_original>
// kernel: tpu_custom_call.1
$region0: #{tpu_custom_call.1}
  #allocation0 [shape = 'u32[]', space=smem, size = 0x4, offset = 0x4, fixed_abs, tag = 'smem constant byte address 0x4 - core index']
  #allocation1 [shape = 'u32[144,128]{1,0:T(1,128)}', space=vmem, size = 0x12000, scoped, tag = 'internal scratch']
  %s0 = inlined_call_operand.hbm [shape: s32[1,16], index: 0, kind: input, shape index: {}]
  %s1 = inlined_call_operand.vmem [shape: bf16[16,16], index: 1, kind: input, shape index: {}]
  %s2 = inlined_call_operand.vmem [shape: f32[16,1], index: 2, kind: input, shape index: {}]
  %s3 = inlined_call_operand.vmem [shape: bf16[16,32], index: 3, kind: input, shape index: {}]
  %s4 = inlined_call_operand.hbm [shape: bf16[2,32,32], index: 4, kind: input, shape index: {}]
  %s5 = inlined_call_operand.vmem [shape: f32[2,1,32], index: 5, kind: input, shape index: {}]
  %s6 = inlined_call_operand.hbm [shape: f32[32,32], index: 6, kind: input, shape index: {}]
  %s7 = inlined_call_operand.vmem [shape: f32[1,32], index: 7, kind: input, shape index: {}]
  %s8 = inlined_call_operand.hbm [shape: f32[32,128], index: 8, kind: input, shape index: {}]
  %s9 = inlined_call_operand.vmem [shape: f32[1,128], index: 9, kind: input, shape index: {}]
  %s10 = inlined_call_operand.hbm [shape: f32[8,128], index: 10, kind: output, shape index: {}]
  %s11 = sld [smem:[#allocation0]]
  $region66: #{tpu_custom_call.1} parent=0
    _
  %s13 = ssub.s32 1, %s11
  %s14 = scalar_select 0, %s13, %s11
  $region1: #{tpu_custom_call.1} parent=0
    #allocation2 [shape = 'u8[512]{0}', space=vmem, size = 0x400, scoped, tag = 'input window, operand 0, single buffered']
    #allocation3 [shape = 's32[1]{0}', space=sflag, size = 0x4, scoped, tag = 'scoped memory for tpu_custom_call.1']
    #allocation4 [shape = 's32[1]{0}', space=sflag, size = 0x4, scoped, tag = 'scoped memory for tpu_custom_call.1']
    #allocation5 [shape = 'u8[16384]{0}', space=vmem, size = 0x4000, scoped, tag = 'input window, operand 4, single buffered']
    #allocation6 [shape = 's32[1]{0}', space=sflag, size = 0x4, scoped, tag = 'scoped memory for tpu_custom_call.1']
    #allocation7 [shape = 'u8[16384]{0}', space=vmem, size = 0x4000, scoped, tag = 'input window, operand 6, single buffered']
    #allocation8 [shape = 'u8[16384]{0}', space=vmem, size = 0x4000, scoped, tag = 'input window, operand 8, single buffered']
    #allocation9 [shape = 's32[1]{0}', space=sflag, size = 0x4, scoped, tag = 'scoped memory for tpu_custom_call.1']
    #allocation10 [shape = 'u8[4096]{0}', space=vmem, size = 0x1000, scoped, tag = 'output window, operand 0, single buffered']
    %15 = vsyncpa [#allocation3], 0
    %16 = vsyncpa [#allocation6], 0
    %17 = vsyncpa [#allocation9], 0
    %18 = vsyncpa [#allocation4], 0
    // Predicated region
    $region2: #{tpu_custom_call.1} parent=1 // pred_check
      _
    $region3: #{tpu_custom_call.1} parent=1 // pred_check_branch
      %20 = sbr.rel (0) target = $region5
    $region4: #{tpu_custom_call.1} parent=1 // pred_region
      %s22 = ssub.s32 16, 16
      %23 = vsyncadd [#allocation3], %s22
      %s25 = sshll.u32 [#allocation2], 4
      %s26 = int_to_ptr.vmem [resolvable:$true] %s25
      %28 = dma.hbm_to_vmem [thread:$0]  %s0, 16, %s26, [#allocation3]
    $region5: #{tpu_custom_call.1} parent=1 // pred_fallthru
      _
    // Predicated region
    $region6: #{tpu_custom_call.1} parent=1 // pred_check
      _
    $region7: #{tpu_custom_call.1} parent=1 // pred_check_branch
      %30 = sbr.rel (0) target = $region9
    $region8: #{tpu_custom_call.1} parent=1 // pred_region
      _
    $region9: #{tpu_custom_call.1} parent=1 // pred_fallthru
      _
    // Predicated region
    $region10: #{tpu_custom_call.1} parent=1 // pred_check
      _
    $region11: #{tpu_custom_call.1} parent=1 // pred_check_branch
      %32 = sbr.rel (0) target = $region13
    $region12: #{tpu_custom_call.1} parent=1 // pred_region
      _
    $region13: #{tpu_custom_call.1} parent=1 // pred_fallthru
      _
    // Predicated region
    $region14: #{tpu_custom_call.1} parent=1 // pred_check
      _
    $region15: #{tpu_custom_call.1} parent=1 // pred_check_branch
      %34 = sbr.rel (0) target = $region17
    $region16: #{tpu_custom_call.1} parent=1 // pred_region
      _
    $region17: #{tpu_custom_call.1} parent=1 // pred_fallthru
      _
    // Predicated region
    $region18: #{tpu_custom_call.1} parent=1 // pred_check
      _
    $region19: #{tpu_custom_call.1} parent=1 // pred_check_branch
      %36 = sbr.rel (0) target = $region21
    $region20: #{tpu_custom_call.1} parent=1 // pred_region
      %s38 = ssub.s32 512, 512
      %39 = vsyncadd [#allocation6], %s38
      %s40 = sshll.u32 [#allocation5], 4
      %s41 = int_to_ptr.vmem [resolvable:$true] %s40
      %46 = dma.hbm_to_vmem [thread:$0]  %s4, 512, %s41, [#allocation6], 64, 64, 4
    $region21: #{tpu_custom_call.1} parent=1 // pred_fallthru
      _
    // Predicated region
    $region22: #{tpu_custom_call.1} parent=1 // pred_check
      _
    $region23: #{tpu_custom_call.1} parent=1 // pred_check_branch
      %48 = sbr.rel (0) target = $region25
    $region24: #{tpu_custom_call.1} parent=1 // pred_region
      _
    $region25: #{tpu_custom_call.1} parent=1 // pred_fallthru
      _
    // Predicated region
    $region26: #{tpu_custom_call.1} parent=1 // pred_check
      _
    $region27: #{tpu_custom_call.1} parent=1 // pred_check_branch
      %50 = sbr.rel (0) target = $region29
    $region28: #{tpu_custom_call.1} parent=1 // pred_region
      %s52 = ssub.s32 512, 512
      %53 = vsyncadd [#allocation6], %s52
      %s54 = sshll.u32 [#allocation7], 4
      %s55 = int_to_ptr.vmem [resolvable:$true] %s54
      %60 = dma.hbm_to_vmem [thread:$0]  %s6, 512, %s55, [#allocation6], 128, 128, 8
    $region29: #{tpu_custom_call.1} parent=1 // pred_fallthru
      _
    // Predicated region
    $region30: #{tpu_custom_call.1} parent=1 // pred_check
      _
    $region31: #{tpu_custom_call.1} parent=1 // pred_check_branch
      %62 = sbr.rel (0) target = $region33
    $region32: #{tpu_custom_call.1} parent=1 // pred_region
      _
    $region33: #{tpu_custom_call.1} parent=1 // pred_fallthru
      _
    // Predicated region
    $region34: #{tpu_custom_call.1} parent=1 // pred_check
      _
    $region35: #{tpu_custom_call.1} parent=1 // pred_check_branch
      %64 = sbr.rel (0) target = $region37
    $region36: #{tpu_custom_call.1} parent=1 // pred_region
      %s66 = ssub.s32 512, 512
      %67 = vsyncadd [#allocation9], %s66
      %s68 = sshll.u32 [#allocation8], 4
      %s69 = int_to_ptr.vmem [resolvable:$true] %s68
      %74 = dma.hbm_to_vmem [thread:$0]  %s8, 512, %s69, [#allocation9], 128, 128, 8
    $region37: #{tpu_custom_call.1} parent=1 // pred_fallthru
      _
    // Predicated region
    $region38: #{tpu_custom_call.1} parent=1 // pred_check
      _
    $region39: #{tpu_custom_call.1} parent=1 // pred_check_branch
      %76 = sbr.rel (0) target = $region41
    $region40: #{tpu_custom_call.1} parent=1 // pred_region
      _
    $region41: #{tpu_custom_call.1} parent=1 // pred_fallthru
      _
    // Predicated region
    $region42: #{tpu_custom_call.1} parent=1 // pred_check
      _
    $region43: #{tpu_custom_call.1} parent=1 // pred_check_branch
      %78 = sbr.rel (0) target = $region45
    $region44: #{tpu_custom_call.1} parent=1 // pred_region
      %79 = dma.done [#allocation3], 16
    $region45: #{tpu_custom_call.1} parent=1 // pred_fallthru
      _
    // Predicated region
    $region46: #{tpu_custom_call.1} parent=1 // pred_check
      _
    $region47: #{tpu_custom_call.1} parent=1 // pred_check_branch
      %81 = sbr.rel (0) target = $region49
    $region48: #{tpu_custom_call.1} parent=1 // pred_region
      %82 = dma.done [#allocation6], 512
    $region49: #{tpu_custom_call.1} parent=1 // pred_fallthru
      _
    // Predicated region
    $region50: #{tpu_custom_call.1} parent=1 // pred_check
      _
    $region51: #{tpu_custom_call.1} parent=1 // pred_check_branch
      %84 = sbr.rel (0) target = $region53
    $region52: #{tpu_custom_call.1} parent=1 // pred_region
      %85 = dma.done [#allocation6], 512
    $region53: #{tpu_custom_call.1} parent=1 // pred_fallthru
      _
    // Predicated region
    $region54: #{tpu_custom_call.1} parent=1 // pred_check
      _
    $region55: #{tpu_custom_call.1} parent=1 // pred_check_branch
      %87 = sbr.rel (0) target = $region57
    $region56: #{tpu_custom_call.1} parent=1 // pred_region
      %88 = dma.done [#allocation9], 512
    $region57: #{tpu_custom_call.1} parent=1 // pred_fallthru
      _
    %v90 = vld [vmem:[%s1] sm:$0xf]
    %v91 = vld [vmem:[%s1 + $0x4] sm:$0xf]
    %v92 = vld [vmem:[%s2] sm:$0xff]
    %v93 = vld [vmem:[%s2 + $0x8] sm:$0xff]
    %v94 = vld [vmem:[%s3] sm:$0xf]
    %v95 = vld [vmem:[%s3 + $0x4] sm:$0xf]
    %v96 = vld [vmem:[#allocation5] sm:$0xf]
    %v97 = vld [vmem:[#allocation5 + $0x4] sm:$0xf]
    %v98 = vld [vmem:[#allocation5 + $0x8] sm:$0xf]
    %v99 = vld [vmem:[#allocation5 + $0xc] sm:$0xf]
    %v100 = vld [vmem:[%s5] sm:$0x1]
    %v103 = vunpack.c.l.b16 %v94
    %v104 = vunpack.c.l.b16 %v95
    %v105 = vpack.c.b16 %v104, %v103
    %v110 = vunpack.c.l.b16 %v96
    %v111 = vunpack.c.l.b16 %v97
    %v112 = vunpack.c.l.b16 %v98
    %v113 = vunpack.c.l.b16 %v99
    %v114 = vpack.c.b16 %v111, %v110
    %v115 = vpack.c.b16 %v113, %v112
    %vm118 = vcmask 261120
    %v120 = vsel %vm118, %v105, 0
    %122 = vmatprep.subr.bf16.mxu0 0
    %123 = vmatpush1.bf16.msra.mxu0 0
    %124 = vmatprep.subr.bf16.mxu0 0
    %125 = vmatpush1.bf16.msra.mxu0 0
    %126 = vmatprep.subr.bf16.mxu0 0
    %127 = vmatpush1.bf16.msra.mxu0 0
    %128 = vmatprep.subr.bf16.mxu0 0
    %129 = vmatpush1.bf16.msra.mxu0 0
    %130 = vmatprep.subr.bf16.mxu0 0
    %131 = vmatpush1.bf16.msra.mxu0 0
    %132 = vmatprep.subr.bf16.mxu0 0
    %133 = vmatpush1.bf16.msra.mxu0 0
    %134 = vmatprep.subr.bf16.mxu0 0
    %135 = vmatpush1.bf16.msra.mxu0 %v115
    %136 = vmatprep.subr.bf16.mxu0 0
    %137 = vmatpush1.bf16.msra.mxu0 %v114
    %138 = vmatprep.subr.bf16.mxu0 0
    %139 = vmatpush2.bf16.msra.mxu0 0
    %140 = vmatprep.subr.bf16.mxu0 0
    %141 = vmatpush2.bf16.msra.mxu0 0
    %142 = vmatprep.subr.bf16.mxu0 0
    %143 = vmatpush2.bf16.msra.mxu0 0
    %144 = vmatprep.subr.bf16.mxu0 0
    %145 = vmatpush2.bf16.msra.mxu0 0
    %146 = vmatprep.subr.bf16.mxu0 0
    %147 = vmatpush2.bf16.msra.mxu0 0
    %148 = vmatprep.subr.bf16.mxu0 0
    %149 = vmatpush2.bf16.msra.mxu0 0
    %150 = vmatprep.subr.bf16.mxu0 0
    %151 = vmatpush2.bf16.msra.mxu0 0
    %152 = vmatprep.subr.bf16.mxu0 0
    %153 = vmatpush2.bf16.msra.mxu0 0
    %154 = vmatprep.mubr.bf16.mxu0 0
    %155 = vmatmul.mubr.bf16.gmra.mxu0 %v120
    %v156 = vpop.f32.mrf.mxu0
    %v157 = vadd.f32 0.0, %v156
    %v158 = vpop.f32.mrf.mxu0
    %v159 = vpop.f32.mrf.mxu0
    %v160 = vadd.f32 0.0, %v159
    %v161 = vpop.f32.mrf.mxu0
    %162 = vdwg.mxu0
    %164 = vset.pattern.permute.xlu0 0
    %165 = vperm.xlu0 %164, %v92
    %v166 = vpop.permute.xlu0 %165
    %169 = vset.pattern.permute.xlu0 0
    %170 = vperm.xlu0 %169, %v93
    %v171 = vpop.permute.xlu0 %170
    %v173 = vmul.f32 %v157, %v166
    %v174 = vmul.f32 %v160, %v171
    %v175 = vpack.c.bf16 %v174, %v173
    %v178 = vunpack.c.l.b16 %v90
    %v179 = vunpack.c.l.b16 %v91
    %v180 = vpack.c.b16 %v179, %v178
    %vm181 = vcmask 130048
    %v183 = vsel %vm181, %v180, 0
    %185 = vmatprep.subr.bf16.mxu0 0
    %186 = vmatpush1.bf16.msra.mxu0 0
    %187 = vmatprep.subr.bf16.mxu0 0
    %188 = vmatpush1.bf16.msra.mxu0 0
    %189 = vmatprep.subr.bf16.mxu0 0
    %190 = vmatpush1.bf16.msra.mxu0 0
    %191 = vmatprep.subr.bf16.mxu0 0
    %192 = vmatpush1.bf16.msra.mxu0 0
    %193 = vmatprep.subr.bf16.mxu0 0
    %194 = vmatpush1.bf16.msra.mxu0 0
    %195 = vmatprep.subr.bf16.mxu0 0
    %196 = vmatpush1.bf16.msra.mxu0 0
    %197 = vmatprep.subr.bf16.mxu0 0
    %198 = vmatpush1.bf16.msra.mxu0 0
    %199 = vmatprep.subr.bf16.mxu0 0
    %200 = vmatpush1.bf16.msra.mxu0 %v175
    %201 = vmatprep.subr.bf16.mxu0 0
    %202 = vmatpush2.bf16.msra.mxu0 0
    %203 = vmatprep.subr.bf16.mxu0 0
    %204 = vmatpush2.bf16.msra.mxu0 0
    %205 = vmatprep.subr.bf16.mxu0 0
    %206 = vmatpush2.bf16.msra.mxu0 0
    %207 = vmatprep.subr.bf16.mxu0 0
    %208 = vmatpush2.bf16.msra.mxu0 0
    %209 = vmatprep.subr.bf16.mxu0 0
    %210 = vmatpush2.bf16.msra.mxu0 0
    %211 = vmatprep.subr.bf16.mxu0 0
    %212 = vmatpush2.bf16.msra.mxu0 0
    %213 = vmatprep.subr.bf16.mxu0 0
    %214 = vmatpush2.bf16.msra.mxu0 0
    %215 = vmatprep.subr.bf16.mxu0 0
    %216 = vmatpush2.bf16.msra.mxu0 0
    %217 = vmatprep.mubr.bf16.mxu0 0
    %218 = vmatmul.mubr.bf16.gmra.mxu0 %v183
    %v219 = vpop.f32.mrf.mxu0
    %v220 = vadd.f32 0.0, %v219
    %v221 = vpop.f32.mrf.mxu0
    %v222 = vpop.f32.mrf.mxu0
    %v223 = vadd.f32 0.0, %v222
    %v224 = vpop.f32.mrf.mxu0
    %225 = vdwg.mxu0
    %v226 = vmul.f32 %v220, %v166
    %v227 = vmul.f32 %v223, %v171
    %v229 = vlaneseq
    %v230 = vshrl.u32 %v229, 7
    %v231 = vsub.s32 0, %v230
    %v232 = vrot.slane %v100, %v231
    %v234 = vadd.f32 %v226, %v232
    %v235 = vadd.f32 %v227, %v232
    %v236 = vmax.f32 %v234, 0.0
    %v237 = vmax.f32 %v235, 0.0
    %v238 = vpack.c.bf16 %v237, %v236
    %v240 = vsel %vm118, %v238, 0
    %242 = vmatprep.subr.bf16.mxu0 0
    %243 = vmatpush1.bf16.msra.mxu0 0
    %244 = vmatprep.subr.bf16.mxu0 0
    %245 = vmatpush1.bf16.msra.mxu0 0
    %246 = vmatprep.subr.bf16.mxu0 0
    %247 = vmatpush1.bf16.msra.mxu0 0
    %248 = vmatprep.subr.bf16.mxu0 0
    %249 = vmatpush1.bf16.msra.mxu0 0
    %250 = vmatprep.subr.bf16.mxu0 0
    %251 = vmatpush1.bf16.msra.mxu0 0
    %252 = vmatprep.subr.bf16.mxu0 0
    %253 = vmatpush1.bf16.msra.mxu0 0
    %254 = vmatprep.subr.bf16.mxu0 0
    %255 = vmatpush1.bf16.msra.mxu0 %v115
    %256 = vmatprep.subr.bf16.mxu0 0
    %257 = vmatpush1.bf16.msra.mxu0 %v114
    %258 = vmatprep.subr.bf16.mxu0 0
    %259 = vmatpush2.bf16.msra.mxu0 0
    %260 = vmatprep.subr.bf16.mxu0 0
    %261 = vmatpush2.bf16.msra.mxu0 0
    %262 = vmatprep.subr.bf16.mxu0 0
    %263 = vmatpush2.bf16.msra.mxu0 0
    %264 = vmatprep.subr.bf16.mxu0 0
    %265 = vmatpush2.bf16.msra.mxu0 0
    %266 = vmatprep.subr.bf16.mxu0 0
    %267 = vmatpush2.bf16.msra.mxu0 0
    %268 = vmatprep.subr.bf16.mxu0 0
    %269 = vmatpush2.bf16.msra.mxu0 0
    %270 = vmatprep.subr.bf16.mxu0 0
    %271 = vmatpush2.bf16.msra.mxu0 0
    %272 = vmatprep.subr.bf16.mxu0 0
    %273 = vmatpush2.bf16.msra.mxu0 0
    %274 = vmatprep.mubr.bf16.mxu0 0
    %275 = vmatmul.mubr.bf16.gmra.mxu0 %v240
    %v276 = vpop.f32.mrf.mxu0
    %v277 = vadd.f32 0.0, %v276
    %v278 = vpop.f32.mrf.mxu0
    %v279 = vpop.f32.mrf.mxu0
    %v280 = vadd.f32 0.0, %v279
    %v281 = vpop.f32.mrf.mxu0
    %282 = vdwg.mxu0
    %v283 = vmul.f32 %v277, %v166
    %v284 = vmul.f32 %v280, %v171
    %v285 = vpack.c.bf16 %v284, %v283
    %286 = vmatprep.subr.bf16.mxu0 0
    %287 = vmatpush1.bf16.msra.mxu0 0
    %288 = vmatprep.subr.bf16.mxu0 0
    %289 = vmatpush1.bf16.msra.mxu0 0
    %290 = vmatprep.subr.bf16.mxu0 0
    %291 = vmatpush1.bf16.msra.mxu0 0
    %292 = vmatprep.subr.bf16.mxu0 0
    %293 = vmatpush1.bf16.msra.mxu0 0
    %294 = vmatprep.subr.bf16.mxu0 0
    %295 = vmatpush1.bf16.msra.mxu0 0
    %296 = vmatprep.subr.bf16.mxu0 0
    %297 = vmatpush1.bf16.msra.mxu0 0
    %298 = vmatprep.subr.bf16.mxu0 0
    %299 = vmatpush1.bf16.msra.mxu0 0
    %300 = vmatprep.subr.bf16.mxu0 0
    %301 = vmatpush1.bf16.msra.mxu0 %v285
    %302 = vmatprep.subr.bf16.mxu0 0
    %303 = vmatpush2.bf16.msra.mxu0 0
    %304 = vmatprep.subr.bf16.mxu0 0
    %305 = vmatpush2.bf16.msra.mxu0 0
    %306 = vmatprep.subr.bf16.mxu0 0
    %307 = vmatpush2.bf16.msra.mxu0 0
    %308 = vmatprep.subr.bf16.mxu0 0
    %309 = vmatpush2.bf16.msra.mxu0 0
    %310 = vmatprep.subr.bf16.mxu0 0
    %311 = vmatpush2.bf16.msra.mxu0 0
    %312 = vmatprep.subr.bf16.mxu0 0
    %313 = vmatpush2.bf16.msra.mxu0 0
    %314 = vmatprep.subr.bf16.mxu0 0
    %315 = vmatpush2.bf16.msra.mxu0 0
    %316 = vmatprep.subr.bf16.mxu0 0
    %317 = vmatpush2.bf16.msra.mxu0 0
    %318 = vmatprep.mubr.bf16.mxu0 0
    %319 = vmatmul.mubr.bf16.gmra.mxu0 %v183
    %v320 = vpop.f32.mrf.mxu0
    %v321 = vadd.f32 0.0, %v320
    %v322 = vpop.f32.mrf.mxu0
    %v323 = vpop.f32.mrf.mxu0
    %v324 = vadd.f32 0.0, %v323
    %v325 = vpop.f32.mrf.mxu0
    %326 = vdwg.mxu0
    %v327 = vmul.f32 %v321, %v166
    %v328 = vmul.f32 %v324, %v171
    %v329 = vadd.f32 %v327, %v232
    %v330 = vadd.f32 %v328, %v232
    %v331 = vpack.c.bf16 %v330, %v329
    %s332 = scalar_lea.vmem [#allocation5], 16
    %v333 = vld [vmem:[%s332] sm:$0xf]
    %v334 = vld [vmem:[%s332 + $0x4] sm:$0xf]
    %v335 = vld [vmem:[%s332 + $0x8] sm:$0xf]
    %v336 = vld [vmem:[%s332 + $0xc] sm:$0xf]
    %s337 = scalar_lea.vmem %s5, 1
    %v338 = vld [vmem:[%s337] sm:$0x1]
    %v343 = vunpack.c.l.b16 %v333
    %v344 = vunpack.c.l.b16 %v334
    %v345 = vunpack.c.l.b16 %v335
    %v346 = vunpack.c.l.b16 %v336
    %v347 = vpack.c.b16 %v344, %v343
    %v348 = vpack.c.b16 %v346, %v345
    %v352 = vsel %vm118, %v331, 0
    %354 = vmatprep.subr.bf16.mxu0 0
    %355 = vmatpush1.bf16.msra.mxu0 0
    %356 = vmatprep.subr.bf16.mxu0 0
    %357 = vmatpush1.bf16.msra.mxu0 0
    %358 = vmatprep.subr.bf16.mxu0 0
    %359 = vmatpush1.bf16.msra.mxu0 0
    %360 = vmatprep.subr.bf16.mxu0 0
    %361 = vmatpush1.bf16.msra.mxu0 0
    %362 = vmatprep.subr.bf16.mxu0 0
    %363 = vmatpush1.bf16.msra.mxu0 0
    %364 = vmatprep.subr.bf16.mxu0 0
    %365 = vmatpush1.bf16.msra.mxu0 0
    %366 = vmatprep.subr.bf16.mxu0 0
    %367 = vmatpush1.bf16.msra.mxu0 %v348
    %368 = vmatprep.subr.bf16.mxu0 0
    %369 = vmatpush1.bf16.msra.mxu0 %v347
    %370 = vmatprep.subr.bf16.mxu0 0
    %371 = vmatpush2.bf16.msra.mxu0 0
    %372 = vmatprep.subr.bf16.mxu0 0
    %373 = vmatpush2.bf16.msra.mxu0 0
    %374 = vmatprep.subr.bf16.mxu0 0
    %375 = vmatpush2.bf16.msra.mxu0 0
    %376 = vmatprep.subr.bf16.mxu0 0
    %377 = vmatpush2.bf16.msra.mxu0 0
    %378 = vmatprep.subr.bf16.mxu0 0
    %379 = vmatpush2.bf16.msra.mxu0 0
    %380 = vmatprep.subr.bf16.mxu0 0
    %381 = vmatpush2.bf16.msra.mxu0 0
    %382 = vmatprep.subr.bf16.mxu0 0
    %383 = vmatpush2.bf16.msra.mxu0 0
    %384 = vmatprep.subr.bf16.mxu0 0
    %385 = vmatpush2.bf16.msra.mxu0 0
    %386 = vmatprep.mubr.bf16.mxu0 0
    %387 = vmatmul.mubr.bf16.gmra.mxu0 %v352
    %v388 = vpop.f32.mrf.mxu0
    %v389 = vadd.f32 0.0, %v388
    %v390 = vpop.f32.mrf.mxu0
    %v391 = vpop.f32.mrf.mxu0
    %v392 = vadd.f32 0.0, %v391
    %v393 = vpop.f32.mrf.mxu0
    %394 = vdwg.mxu0
    %v395 = vmul.f32 %v389, %v166
    %v396 = vmul.f32 %v392, %v171
    %v397 = vpack.c.bf16 %v396, %v395
    %398 = vmatprep.subr.bf16.mxu0 0
    %399 = vmatpush1.bf16.msra.mxu0 0
    %400 = vmatprep.subr.bf16.mxu0 0
    %401 = vmatpush1.bf16.msra.mxu0 0
    %402 = vmatprep.subr.bf16.mxu0 0
    %403 = vmatpush1.bf16.msra.mxu0 0
    %404 = vmatprep.subr.bf16.mxu0 0
    %405 = vmatpush1.bf16.msra.mxu0 0
    %406 = vmatprep.subr.bf16.mxu0 0
    %407 = vmatpush1.bf16.msra.mxu0 0
    %408 = vmatprep.subr.bf16.mxu0 0
    %409 = vmatpush1.bf16.msra.mxu0 0
    %410 = vmatprep.subr.bf16.mxu0 0
    %411 = vmatpush1.bf16.msra.mxu0 0
    %412 = vmatprep.subr.bf16.mxu0 0
    %413 = vmatpush1.bf16.msra.mxu0 %v397
    %414 = vmatprep.subr.bf16.mxu0 0
    %415 = vmatpush2.bf16.msra.mxu0 0
    %416 = vmatprep.subr.bf16.mxu0 0
    %417 = vmatpush2.bf16.msra.mxu0 0
    %418 = vmatprep.subr.bf16.mxu0 0
    %419 = vmatpush2.bf16.msra.mxu0 0
    %420 = vmatprep.subr.bf16.mxu0 0
    %421 = vmatpush2.bf16.msra.mxu0 0
    %422 = vmatprep.subr.bf16.mxu0 0
    %423 = vmatpush2.bf16.msra.mxu0 0
    %424 = vmatprep.subr.bf16.mxu0 0
    %425 = vmatpush2.bf16.msra.mxu0 0
    %426 = vmatprep.subr.bf16.mxu0 0
    %427 = vmatpush2.bf16.msra.mxu0 0
    %428 = vmatprep.subr.bf16.mxu0 0
    %429 = vmatpush2.bf16.msra.mxu0 0
    %430 = vmatprep.mubr.bf16.mxu0 0
    %431 = vmatmul.mubr.bf16.gmra.mxu0 %v183
    %v432 = vpop.f32.mrf.mxu0
    %v433 = vadd.f32 0.0, %v432
    %v434 = vpop.f32.mrf.mxu0
    %v435 = vpop.f32.mrf.mxu0
    %v436 = vadd.f32 0.0, %v435
    %v437 = vpop.f32.mrf.mxu0
    %438 = vdwg.mxu0
    %v439 = vmul.f32 %v433, %v166
    %v440 = vmul.f32 %v436, %v171
    %v442 = vlaneseq
    %v443 = vshrl.u32 %v442, 7
    %v444 = vsub.s32 0, %v443
    %v445 = vrot.slane %v338, %v444
    %v447 = vadd.f32 %v439, %v445
    %v448 = vadd.f32 %v440, %v445
    %v449 = vmax.f32 %v447, 0.0
    %v450 = vmax.f32 %v448, 0.0
    %v451 = vpack.c.bf16 %v450, %v449
    %v453 = vsel %vm118, %v451, 0
    %455 = vmatprep.subr.bf16.mxu0 0
    %456 = vmatpush1.bf16.msra.mxu0 0
    %457 = vmatprep.subr.bf16.mxu0 0
    %458 = vmatpush1.bf16.msra.mxu0 0
    %459 = vmatprep.subr.bf16.mxu0 0
    %460 = vmatpush1.bf16.msra.mxu0 0
    %461 = vmatprep.subr.bf16.mxu0 0
    %462 = vmatpush1.bf16.msra.mxu0 0
    %463 = vmatprep.subr.bf16.mxu0 0
    %464 = vmatpush1.bf16.msra.mxu0 0
    %465 = vmatprep.subr.bf16.mxu0 0
    %466 = vmatpush1.bf16.msra.mxu0 0
    %467 = vmatprep.subr.bf16.mxu0 0
    %468 = vmatpush1.bf16.msra.mxu0 %v348
    %469 = vmatprep.subr.bf16.mxu0 0
    %470 = vmatpush1.bf16.msra.mxu0 %v347
    %471 = vmatprep.subr.bf16.mxu0 0
    %472 = vmatpush2.bf16.msra.mxu0 0
    %473 = vmatprep.subr.bf16.mxu0 0
    %474 = vmatpush2.bf16.msra.mxu0 0
    %475 = vmatprep.subr.bf16.mxu0 0
    %476 = vmatpush2.bf16.msra.mxu0 0
    %477 = vmatprep.subr.bf16.mxu0 0
    %478 = vmatpush2.bf16.msra.mxu0 0
    %479 = vmatprep.subr.bf16.mxu0 0
    %480 = vmatpush2.bf16.msra.mxu0 0
    %481 = vmatprep.subr.bf16.mxu0 0
    %482 = vmatpush2.bf16.msra.mxu0 0
    %483 = vmatprep.subr.bf16.mxu0 0
    %484 = vmatpush2.bf16.msra.mxu0 0
    %485 = vmatprep.subr.bf16.mxu0 0
    %486 = vmatpush2.bf16.msra.mxu0 0
    %487 = vmatprep.mubr.bf16.mxu0 0
    %488 = vmatmul.mubr.bf16.gmra.mxu0 %v453
    %v489 = vpop.f32.mrf.mxu0
    %v490 = vadd.f32 0.0, %v489
    %v491 = vpop.f32.mrf.mxu0
    %v492 = vpop.f32.mrf.mxu0
    %v493 = vadd.f32 0.0, %v492
    %v494 = vpop.f32.mrf.mxu0
    %495 = vdwg.mxu0
    %v496 = vmul.f32 %v490, %v166
    %v497 = vmul.f32 %v493, %v171
    %v498 = vpack.c.bf16 %v497, %v496
    %499 = vmatprep.subr.bf16.mxu0 0
    %500 = vmatpush1.bf16.msra.mxu0 0
    %501 = vmatprep.subr.bf16.mxu0 0
    %502 = vmatpush1.bf16.msra.mxu0 0
    %503 = vmatprep.subr.bf16.mxu0 0
    %504 = vmatpush1.bf16.msra.mxu0 0
    %505 = vmatprep.subr.bf16.mxu0 0
    %506 = vmatpush1.bf16.msra.mxu0 0
    %507 = vmatprep.subr.bf16.mxu0 0
    %508 = vmatpush1.bf16.msra.mxu0 0
    %509 = vmatprep.subr.bf16.mxu0 0
    %510 = vmatpush1.bf16.msra.mxu0 0
    %511 = vmatprep.subr.bf16.mxu0 0
    %512 = vmatpush1.bf16.msra.mxu0 0
    %513 = vmatprep.subr.bf16.mxu0 0
    %514 = vmatpush1.bf16.msra.mxu0 %v498
    %515 = vmatprep.subr.bf16.mxu0 0
    %516 = vmatpush2.bf16.msra.mxu0 0
    %517 = vmatprep.subr.bf16.mxu0 0
    %518 = vmatpush2.bf16.msra.mxu0 0
    %519 = vmatprep.subr.bf16.mxu0 0
    %520 = vmatpush2.bf16.msra.mxu0 0
    %521 = vmatprep.subr.bf16.mxu0 0
    %522 = vmatpush2.bf16.msra.mxu0 0
    %523 = vmatprep.subr.bf16.mxu0 0
    %524 = vmatpush2.bf16.msra.mxu0 0
    %525 = vmatprep.subr.bf16.mxu0 0
    %526 = vmatpush2.bf16.msra.mxu0 0
    %527 = vmatprep.subr.bf16.mxu0 0
    %528 = vmatpush2.bf16.msra.mxu0 0
    %529 = vmatprep.subr.bf16.mxu0 0
    %530 = vmatpush2.bf16.msra.mxu0 0
    %531 = vmatprep.mubr.bf16.mxu0 0
    %532 = vmatmul.mubr.bf16.gmra.mxu0 %v183
    %v533 = vpop.f32.mrf.mxu0
    %v534 = vadd.f32 0.0, %v533
    %v535 = vpop.f32.mrf.mxu0
    %v536 = vpop.f32.mrf.mxu0
    %v537 = vadd.f32 0.0, %v536
    %v538 = vpop.f32.mrf.mxu0
    %539 = vdwg.mxu0
    %v540 = vmul.f32 %v534, %v166
    %v541 = vmul.f32 %v537, %v171
    %v542 = vadd.f32 %v540, %v445
    %v543 = vadd.f32 %v541, %v445
    %v544 = vpack.c.bf16 %v543, %v542
    %v545 = vlaneseq
    %v546 = vshrl.u32 %v545, 7
    %v547 = vld [vmem:[#allocation2] sm:$0x1]
    %v548 = vlaneseq
    %v549 = vshrl.u32 %v548, 7
    %v550 = vsub.s32 0, %v549
    %v551 = vrot.slane %v547, %v550
    %vm552 = vcmp.eq.s32.totalorder %v546, %v551
    %v553 = vsel %vm552, 1, 0
    %v554 = vcvt.s32.f32 %v553
    %v555 = vpack.c.bf16 %v554, %v554
    %v557 = vsel %vm181, %v555, 0
    %559 = vmatprep.subr.bf16.mxu0 0
    %560 = vmatpush1.bf16.msra.mxu0 0
    %561 = vmatprep.subr.bf16.mxu0 0
    %562 = vmatpush1.bf16.msra.mxu0 0
    %563 = vmatprep.subr.bf16.mxu0 0
    %564 = vmatpush1.bf16.msra.mxu0 0
    %565 = vmatprep.subr.bf16.mxu0 0
    %566 = vmatpush1.bf16.msra.mxu0 0
    %567 = vmatprep.subr.bf16.mxu0 0
    %568 = vmatpush1.bf16.msra.mxu0 0
    %569 = vmatprep.subr.bf16.mxu0 0
    %570 = vmatpush1.bf16.msra.mxu0 0
    %571 = vmatprep.subr.bf16.mxu0 0
    %572 = vmatpush1.bf16.msra.mxu0 0
    %573 = vmatprep.subr.bf16.mxu0 0
    %574 = vmatpush1.bf16.msra.mxu0 %v544
    %575 = vmatprep.subr.bf16.mxu0 0
    %576 = vmatpush2.bf16.msra.mxu0 0
    %577 = vmatprep.subr.bf16.mxu0 0
    %578 = vmatpush2.bf16.msra.mxu0 0
    %579 = vmatprep.subr.bf16.mxu0 0
    %580 = vmatpush2.bf16.msra.mxu0 0
    %581 = vmatprep.subr.bf16.mxu0 0
    %582 = vmatpush2.bf16.msra.mxu0 0
    %583 = vmatprep.subr.bf16.mxu0 0
    %584 = vmatpush2.bf16.msra.mxu0 0
    %585 = vmatprep.subr.bf16.mxu0 0
    %586 = vmatpush2.bf16.msra.mxu0 0
    %587 = vmatprep.subr.bf16.mxu0 0
    %588 = vmatpush2.bf16.msra.mxu0 0
    %589 = vmatprep.subr.bf16.mxu0 0
    %590 = vmatpush2.bf16.msra.mxu0 0
    %591 = vmatprep.mubr.bf16.mxu0 0
    %592 = vmatmul.mubr.bf16.gmra.mxu0 %v557
    %v593 = vpop.f32.mrf.mxu0
    %v594 = vadd.f32 0.0, %v593
    %v595 = vpop.f32.mrf.mxu0
    %v596 = vpop.f32.mrf.mxu0
    %v597 = vpop.f32.mrf.mxu0
    %598 = vdwg.mxu0
    %v599 = vld [vmem:[#allocation7] sm:$0xff]
    %v600 = vld [vmem:[#allocation7 + $0x8] sm:$0xff]
    %v601 = vld [vmem:[#allocation7 + $0x10] sm:$0xff]
    %v602 = vld [vmem:[#allocation7 + $0x18] sm:$0xff]
    %v603 = vld [vmem:[%s7] sm:$0x1]
    %v605 = vlaneseq
    %v606 = vshrl.u32 %v605, 7
    %v607 = vsub.s32 0, %v606
    %v608 = vrot.slane %v603, %v607
    %v611 = vsel %vm118, %v594, 0
    %613 = vmatprep.subr.mxu0 0.0
    %614 = vmatpush1.msra.mxu0 0.0
    %615 = vmatprep.subr.mxu0 0.0
    %616 = vmatpush1.msra.mxu0 0.0
    %617 = vmatprep.subr.mxu0 0.0
    %618 = vmatpush1.msra.mxu0 0.0
    %619 = vmatprep.subr.mxu0 0.0
    %620 = vmatpush1.msra.mxu0 0.0
    %621 = vmatprep.subr.mxu0 0.0
    %622 = vmatpush1.msra.mxu0 0.0
    %623 = vmatprep.subr.mxu0 0.0
    %624 = vmatpush1.msra.mxu0 0.0
    %625 = vmatprep.subr.mxu0 0.0
    %626 = vmatpush1.msra.mxu0 0.0
    %627 = vmatprep.subr.mxu0 0.0
    %628 = vmatpush1.msra.mxu0 0.0
    %629 = vmatprep.subr.mxu0 0.0
    %630 = vmatpush1.msra.mxu0 0.0
    %631 = vmatprep.subr.mxu0 0.0
    %632 = vmatpush1.msra.mxu0 0.0
    %633 = vmatprep.subr.mxu0 0.0
    %634 = vmatpush1.msra.mxu0 0.0
    %635 = vmatprep.subr.mxu0 0.0
    %636 = vmatpush1.msra.mxu0 0.0
    %637 = vmatprep.subr.mxu0 0.0
    %638 = vmatpush1.msra.mxu0 %v602
    %639 = vmatprep.subr.mxu0 0.0
    %640 = vmatpush1.msra.mxu0 %v601
    %641 = vmatprep.subr.mxu0 0.0
    %642 = vmatpush1.msra.mxu0 %v600
    %643 = vmatprep.subr.mxu0 0.0
    %644 = vmatpush1.msra.mxu0 %v599
    %645 = vmatprep.subr.mxu0 0.0
    %646 = vmatpush2.msra.mxu0 0.0
    %647 = vmatprep.subr.mxu0 0.0
    %648 = vmatpush2.msra.mxu0 0.0
    %649 = vmatprep.subr.mxu0 0.0
    %650 = vmatpush2.msra.mxu0 0.0
    %651 = vmatprep.subr.mxu0 0.0
    %652 = vmatpush2.msra.mxu0 0.0
    %653 = vmatprep.subr.mxu0 0.0
    %654 = vmatpush2.msra.mxu0 0.0
    %655 = vmatprep.subr.mxu0 0.0
    %656 = vmatpush2.msra.mxu0 0.0
    %657 = vmatprep.subr.mxu0 0.0
    %658 = vmatpush2.msra.mxu0 0.0
    %659 = vmatprep.subr.mxu0 0.0
    %660 = vmatpush2.msra.mxu0 0.0
    %661 = vmatprep.subr.mxu0 0.0
    %662 = vmatpush2.msra.mxu0 0.0
    %663 = vmatprep.subr.mxu0 0.0
    %664 = vmatpush2.msra.mxu0 0.0
    %665 = vmatprep.subr.mxu0 0.0
    %666 = vmatpush2.msra.mxu0 0.0
    %667 = vmatprep.subr.mxu0 0.0
    %668 = vmatpush2.msra.mxu0 0.0
    %669 = vmatprep.subr.mxu0 0.0
    %670 = vmatpush2.msra.mxu0 0.0
    %671 = vmatprep.subr.mxu0 0.0
    %672 = vmatpush2.msra.mxu0 0.0
    %673 = vmatprep.subr.mxu0 0.0
    %674 = vmatpush2.msra.mxu0 0.0
    %675 = vmatprep.subr.mxu0 0.0
    %676 = vmatpush2.msra.mxu0 0.0
    %677 = vmatprep.mubr.f32.mxu0 0.0
    %678 = vmatmul.mubr.f32.gmra.mxu0 %v611
    %v679 = vpop.f32.mrf.mxu0
    %v680 = vadd.f32 %v608, %v679
    %v681 = vpop.f32.mrf.mxu0
    %682 = vdwg.mxu0
    %v683 = vmax.f32 %v680, 0.0
    %v684 = vld [vmem:[#allocation8] sm:$0xff]
    %v685 = vld [vmem:[#allocation8 + $0x8] sm:$0xff]
    %v686 = vld [vmem:[#allocation8 + $0x10] sm:$0xff]
    %v687 = vld [vmem:[#allocation8 + $0x18] sm:$0xff]
    %v688 = vld [vmem:[%s9] sm:$0x1]
    %v690 = vlaneseq
    %v691 = vshrl.u32 %v690, 7
    %v692 = vsub.s32 0, %v691
    %v693 = vrot.slane %v688, %v692
    %v696 = vsel %vm118, %v683, 0
    %698 = vmatprep.subr.mxu0 0.0
    %699 = vmatpush1.msra.mxu0 0.0
    %700 = vmatprep.subr.mxu0 0.0
    %701 = vmatpush1.msra.mxu0 0.0
    %702 = vmatprep.subr.mxu0 0.0
    %703 = vmatpush1.msra.mxu0 0.0
    %704 = vmatprep.subr.mxu0 0.0
    %705 = vmatpush1.msra.mxu0 0.0
    %706 = vmatprep.subr.mxu0 0.0
    %707 = vmatpush1.msra.mxu0 0.0
    %708 = vmatprep.subr.mxu0 0.0
    %709 = vmatpush1.msra.mxu0 0.0
    %710 = vmatprep.subr.mxu0 0.0
    %711 = vmatpush1.msra.mxu0 0.0
    %712 = vmatprep.subr.mxu0 0.0
    %713 = vmatpush1.msra.mxu0 0.0
    %714 = vmatprep.subr.mxu0 0.0
    %715 = vmatpush1.msra.mxu0 0.0
    %716 = vmatprep.subr.mxu0 0.0
    %717 = vmatpush1.msra.mxu0 0.0
    %718 = vmatprep.subr.mxu0 0.0
    %719 = vmatpush1.msra.mxu0 0.0
    %720 = vmatprep.subr.mxu0 0.0
    %721 = vmatpush1.msra.mxu0 0.0
    %722 = vmatprep.subr.mxu0 0.0
    %723 = vmatpush1.msra.mxu0 %v687
    %724 = vmatprep.subr.mxu0 0.0
    %725 = vmatpush1.msra.mxu0 %v686
    %726 = vmatprep.subr.mxu0 0.0
    %727 = vmatpush1.msra.mxu0 %v685
    %728 = vmatprep.subr.mxu0 0.0
    %729 = vmatpush1.msra.mxu0 %v684
    %730 = vmatprep.subr.mxu0 0.0
    %731 = vmatpush2.msra.mxu0 0.0
    %732 = vmatprep.subr.mxu0 0.0
    %733 = vmatpush2.msra.mxu0 0.0
    %734 = vmatprep.subr.mxu0 0.0
    %735 = vmatpush2.msra.mxu0 0.0
    %736 = vmatprep.subr.mxu0 0.0
    %737 = vmatpush2.msra.mxu0 0.0
    %738 = vmatprep.subr.mxu0 0.0
    %739 = vmatpush2.msra.mxu0 0.0
    %740 = vmatprep.subr.mxu0 0.0
    %741 = vmatpush2.msra.mxu0 0.0
    %742 = vmatprep.subr.mxu0 0.0
    %743 = vmatpush2.msra.mxu0 0.0
    %744 = vmatprep.subr.mxu0 0.0
    %745 = vmatpush2.msra.mxu0 0.0
    %746 = vmatprep.subr.mxu0 0.0
    %747 = vmatpush2.msra.mxu0 0.0
    %748 = vmatprep.subr.mxu0 0.0
    %749 = vmatpush2.msra.mxu0 0.0
    %750 = vmatprep.subr.mxu0 0.0
    %751 = vmatpush2.msra.mxu0 0.0
    %752 = vmatprep.subr.mxu0 0.0
    %753 = vmatpush2.msra.mxu0 0.0
    %754 = vmatprep.subr.mxu0 0.0
    %755 = vmatpush2.msra.mxu0 0.0
    %756 = vmatprep.subr.mxu0 0.0
    %757 = vmatpush2.msra.mxu0 0.0
    %758 = vmatprep.subr.mxu0 0.0
    %759 = vmatpush2.msra.mxu0 0.0
    %760 = vmatprep.subr.mxu0 0.0
    %761 = vmatpush2.msra.mxu0 0.0
    %762 = vmatprep.mubr.f32.mxu0 0.0
    %763 = vmatmul.mubr.f32.gmra.mxu0 %v696
    %v764 = vpop.f32.mrf.mxu0
    %v765 = vadd.f32 %v693, %v764
    %v766 = vpop.f32.mrf.mxu0
    %767 = vdwg.mxu0
    %768 = vst [vmem:[#allocation10] sm:$0xff] %v765
    // Predicated region
    $region58: #{tpu_custom_call.1} parent=1 // pred_check
      _
    $region59: #{tpu_custom_call.1} parent=1 // pred_check_branch
      %770 = sbr.rel (0) target = $region61
    $region60: #{tpu_custom_call.1} parent=1 // pred_region
      %s772 = ssub.s32 128, 128
      %773 = vsyncadd [#allocation4], %s772
      %s775 = sshll.u32 [#allocation10], 4
      %s776 = int_to_ptr.vmem [resolvable:$true] %s775
      %778 = dma.vmem_to_hbm [thread:$0]  %s776, 128, %s10, [#allocation4]
    $region61: #{tpu_custom_call.1} parent=1 // pred_fallthru
      _
    // Predicated region
    $region62: #{tpu_custom_call.1} parent=1 // pred_check
      _
    $region63: #{tpu_custom_call.1} parent=1 // pred_check_branch
      %780 = sbr.rel (0) target = $region65
    $region64: #{tpu_custom_call.1} parent=1 // pred_region
      %781 = dma.done [#allocation4], 128
    $region65: #{tpu_custom_call.1} parent=1 // pred_fallthru
      _
    %782 = vsyncpa [#allocation3], 1
    %783 = vsyncpa [#allocation6], 1
    %784 = vsyncpa [#allocation9], 1
    %785 = vsyncpa [#allocation4], 1

</llo_original>
